<compile_context>
chip_gen: v7x
topology: tpu7x:2x2x1
jax: 0.10.0
libtpu: 0.0.40
codegen_flags: <defaults>
</compile_context>

<pallas_src>
import functools

import jax
import jax.numpy as jnp
from jax.experimental import pallas as pl
from jax.experimental.pallas import tpu as pltpu


def _rbf_kernel(logc2_ref, x1_ref, x2t_ref, o_ref):
    # logc2_ref : (1, 1)     SMEM -- log(c**2)
    # x1_ref    : (TM, f+2)  VMEM -- [X1/l - mu, 1, -0.5*||.||^2] tile
    # x2t_ref   : (f+2, TN)  VMEM -- [(X2/l - mu)^T ; logc2 - 0.5*||.||^2 ; 1]
    # o_ref     : (TM, TN)   VMEM
    # MXU contraction directly yields  log(c^2) - 0.5 * ||x1 - x2||^2.
    e = jnp.dot(x1_ref[...], x2t_ref[...], preferred_element_type=jnp.float32)
    # Clamp exponent at log(c^2)  (equivalent to d^2 >= 0 floor), then EUP exp.
    o_ref[...] = jnp.exp(jnp.minimum(e, logc2_ref[0, 0])).astype(o_ref.dtype)


def _round_up(x, m):
    return ((x + m - 1) // m) * m


def _cdiv(a, b):
    return (a + b - 1) // b


def _tile_vmem_bytes(tm, tn, fa):
    # Double-buffered f32 tiles: X1 tile, X2^T tile, output tile.
    return 2 * 4 * (tm * tn + tm * fa + fa * tn)


@functools.partial(jax.jit, static_argnames=("tm_max", "tn_max"))
def rbf_pallas(X1, X2, c, l, *, tm_max=512, tn_max=1024):
    """X1: (n1, f), X2: (n2, f) or None, c: scalar, l: (f,). Returns (n1, n2) f32."""
    X1 = X1.astype(jnp.float32)
    n1, f = X1.shape
    symmetric = X2 is None
    n2 = n1 if symmetric else X2.shape[0]

    inv_l = (1.0 / l).astype(jnp.float32)                         # (f,)
    x1s = X1 * inv_l                                              # (n1, f)
    # RBF is shift-invariant: centering improves f32 accuracy of the
    # expanded-norm formulation near the diagonal.
    mu = jnp.mean(x1s, axis=0, keepdims=True)
    x1s = x1s - mu
    if symmetric:
        x2s = x1s                                                 # reuse, no recompute
    else:
        x2s = X2.astype(jnp.float32) * inv_l - mu                 # (n2, f)

    logc2 = (2.0 * jnp.log(c)).astype(jnp.float32)                # scalar log(c^2)

    h1 = 0.5 * jnp.sum(x1s * x1s, axis=-1, keepdims=True)         # (n1, 1)
    h2 = 0.5 * jnp.sum(x2s * x2s, axis=-1)[None, :]               # (1, n2)

    # Augment K by 2 so the MXU produces the full exponent directly.
    x1aug = jnp.concatenate(
        [x1s, jnp.ones((n1, 1), jnp.float32), -h1], axis=1)       # (n1, f+2)
    x2taug = jnp.concatenate(
        [x2s.T, logc2 - h2, jnp.ones((1, n2), jnp.float32)], axis=0)  # (f+2, n2)
    fa = f + 2

    # Balanced tiling: pick tile count first, then tile size (8 / 128 aligned).
    ntm = _cdiv(n1, tm_max)
    tm = _round_up(_cdiv(n1, ntm), 8)
    ntn = _cdiv(n2, tn_max)
    tn = _round_up(_cdiv(n2, ntn), 128)

    # VMEM budget guard (safe for v5e 16 MiB scoped default / v7x 64 MiB phys).
    budget = 24 << 20
    while _tile_vmem_bytes(tm, tn, fa) > budget and tn > 128:
        tn = _round_up(max(tn // 2, 128), 128)
    while _tile_vmem_bytes(tm, tn, fa) > budget and tm > 8:
        tm = _round_up(max(tm // 2, 8), 8)
    # TODO(synk): for very large f, add a 3rd "arbitrary" grid axis over K with
    # an f32 VMEM accumulator instead of shrinking tm/tn; and exploit symmetry
    # (triangular tile grid via scalar prefetch) for the X2=None path.

    n1p = _round_up(n1, tm)
    n2p = _round_up(n2, tn)
    if n1p != n1:
        x1aug = jnp.pad(x1aug, ((0, n1p - n1), (0, 0)))
    if n2p != n2:
        x2taug = jnp.pad(x2taug, ((0, 0), (0, n2p - n2)))

    logc2_s = jnp.reshape(logc2, (1, 1))

    grid = (n1p // tm, n2p // tn)
    vmem_limit = int(min(_tile_vmem_bytes(tm, tn, fa) + (8 << 20), 64 << 20))

    out = pl.pallas_call(
        _rbf_kernel,
        out_shape=jax.ShapeDtypeStruct((n1p, n2p), jnp.float32),
        grid_spec=pltpu.PrefetchScalarGridSpec(
            num_scalar_prefetch=0,
            grid=grid,
            in_specs=[
                pl.BlockSpec(memory_space=pltpu.SMEM),            # log(c^2) scalar
                pl.BlockSpec((tm, fa), lambda i, j: (i, 0)),      # augmented X1 tile
                pl.BlockSpec((fa, tn), lambda i, j: (0, j)),      # augmented X2^T tile
            ],
            out_specs=pl.BlockSpec((tm, tn), lambda i, j: (i, j)),
        ),
        compiler_params=pltpu.CompilerParams(
            dimension_semantics=("parallel", "parallel"),
            vmem_limit_bytes=vmem_limit,
        ),
        cost_estimate=pl.CostEstimate(
            flops=2 * n1p * n2p * fa,
            transcendentals=n1p * n2p,
            bytes_accessed=4 * (n1p * n2p + n1p * fa + fa * n2p),
        ),
    )(logc2_s, x1aug, x2taug)

    if (n1p, n2p) != (n1, n2):
        out = out[:n1, :n2]
    return out


class RBF:
    """JAX port of the PyTorch RBF StationaryKernel."""

    def __init__(self, overall_scaling, character_length):
        # Parameters are stored in log-space, exactly like the torch module.
        self._c = jnp.log(jnp.asarray(overall_scaling, dtype=jnp.float32))
        self._l = jnp.log(jnp.asarray(character_length, dtype=jnp.float32))

    @property
    def c(self):
        return jnp.exp(self._c)

    @property
    def l(self):
        return jnp.exp(self._l)

    def __call__(self, X1, X2=None):
        c_scalar = jnp.reshape(self.c, ())  # size-1 tensor -> scalar
        # X2=None is handled inside rbf_pallas (reuses scaled X1 arrays).
        return rbf_pallas(X1, X2, c_scalar, self.l)


def _rbf_reference(X1, X2, c, l):
    X1_l = X1 / l
    X2_l = X2 / l
    d = X1_l[:, None, :] - X2_l[None, :, :]
    r2 = jnp.sum(d * d, axis=-1)
    return (c ** 2) * jnp.exp(-0.5 * r2)


if __name__ == "__main__":
    key = jax.random.PRNGKey(0)
    k1, k2, k3 = jax.random.split(key, 3)

    n1, n2, f = 16, 8, 4
    X1 = jax.random.normal(k1, (n1, f), dtype=jnp.float32)
    X2 = jax.random.normal(k2, (n2, f), dtype=jnp.float32)

    overall_scaling = jnp.array([1.5], dtype=jnp.float32)            # size-1 tensor
    character_length = jnp.linspace(0.5, 2.0, f, dtype=jnp.float32)  # n_features

    kern = RBF(overall_scaling, character_length)
    c_s = jnp.reshape(kern.c, ())

    # X1 vs X2 path
    out12 = jax.block_until_ready(kern(X1, X2))
    ref12 = _rbf_reference(X1, X2, c_s, kern.l)
    assert out12.shape == (n1, n2)
    assert jnp.allclose(out12, ref12, atol=1e-5, rtol=1e-5)

    # X2=None path (self-kernel, reuses scaled X1)
    out11 = jax.block_until_ready(kern(X1))
    ref11 = _rbf_reference(X1, X1, c_s, kern.l)
    assert out11.shape == (n1, n1)
    assert jnp.allclose(out11, ref11, atol=1e-5, rtol=1e-5)

    # Multi-tile grid + padding path (forced small tiles so grid=(3, 2)).
    n1b, n2b = 24, 200
    X1b = jax.random.normal(k3, (n1b, f), dtype=jnp.float32)
    X2b = jax.random.normal(k2, (n2b, f), dtype=jnp.float32)
    outg = jax.block_until_ready(
        rbf_pallas(X1b, X2b, c_s, kern.l, tm_max=8, tn_max=128))
    refg = _rbf_reference(X1b, X2b, c_s, kern.l)
    assert outg.shape == (n1b, n2b)
    assert jnp.allclose(outg, refg, atol=1e-5, rtol=1e-5)

    print("KERNEL_OK")
</pallas_src>

<mosaic_0001>
module attributes {stable_mosaic.version = 11 : i64} {
  func.func @_rbf_kernel(%arg0: i32, %arg1: i32, %arg2: memref<1x1xf32, #tpu.memory_space<smem>>, %arg3: memref<16x6xf32, #tpu.memory_space<vmem>>, %arg4: memref<6x128xf32, #tpu.memory_space<vmem>>, %arg5: memref<16x128xf32, #tpu.memory_space<vmem>>) attributes {dimension_semantics = [#tpu.dimension_semantics<parallel>, #tpu.dimension_semantics<parallel>], iteration_bounds = array<i64: 1, 1>, scalar_prefetch = 0 : i64, scratch_operands = 0 : i64, tpu.core_type = #tpu.core_type<tc>, window_params = [{transform_indices = @transform_0, window_bounds = array<i64: 1, 1>}, {transform_indices = @transform_1, window_bounds = array<i64: 16, 6>}, {transform_indices = @transform_2, window_bounds = array<i64: 6, 128>}, {transform_indices = @transform_3, window_bounds = array<i64: 16, 128>}]} {
    %c0 = arith.constant 0 : index
    %c0_0 = arith.constant 0 : index
    %0 = vector.load %arg3[%c0, %c0_0] : memref<16x6xf32, #tpu.memory_space<vmem>>, vector<16x6xf32>
    %c0_1 = arith.constant 0 : index
    %c0_2 = arith.constant 0 : index
    %1 = vector.load %arg4[%c0_1, %c0_2] : memref<6x128xf32, #tpu.memory_space<vmem>>, vector<6x128xf32>
    %cst = arith.constant dense<0.000000e+00> : vector<16x128xf32>
    %2 = tpu.matmul %0, %1, %cst {dimension_numbers = #tpu.dot_dimension_numbers<[1], [0], [0], [1], [0, 0, 1, 1], [], []>} : vector<16x6xf32>, vector<6x128xf32>, vector<16x128xf32> -> vector<16x128xf32>
    %c0_3 = arith.constant 0 : index
    %c0_4 = arith.constant 0 : index
    %3 = memref.load %arg2[%c0_3, %c0_4] : memref<1x1xf32, #tpu.memory_space<smem>>
    %4 = vector.broadcast %3 : f32 to vector<16x128xf32>
    %5 = arith.minimumf %2, %4 : vector<16x128xf32>
    %6 = math.exp %5 : vector<16x128xf32>
    %c0_5 = arith.constant 0 : index
    %c0_6 = arith.constant 0 : index
    %7 = vector.load %arg5[%c0_5, %c0_6] : memref<16x128xf32, #tpu.memory_space<vmem>>, vector<16x128xf32>
    tpu.vector_store %arg5[%c0_5, %c0_6], %6 {strides = array<i32>} : memref<16x128xf32, #tpu.memory_space<vmem>>, vector<16x128xf32>,
    return
  }
  func.func @transform_0(%arg0: i32, %arg1: i32) -> (i32, i32) {
    %c0_i32 = arith.constant 0 : i32
    %c0_i32_0 = arith.constant 0 : i32
    %c0_i32_1 = arith.constant 0 : i32
    return %c0_i32, %c0_i32_0 : i32, i32
  }
  func.func @transform_1(%arg0: i32, %arg1: i32) -> (i32, i32) {
    %c0_i32 = arith.constant 0 : i32
    %c0_i32_0 = arith.constant 0 : i32
    return %arg0, %c0_i32 : i32, i32
  }
  func.func @transform_2(%arg0: i32, %arg1: i32) -> (i32, i32) {
    %c0_i32 = arith.constant 0 : i32
    %c0_i32_0 = arith.constant 0 : i32
    return %c0_i32, %arg1 : i32, i32
  }
  func.func @transform_3(%arg0: i32, %arg1: i32) -> (i32, i32) {
    %c0_i32 = arith.constant 0 : i32
    return %arg0, %arg1 : i32, i32
  }
}

</mosaic_0001>

<llo_original>
// kernel: rbf_pallas.1
$region0: #{rbf_pallas.1}
  #allocation0 [shape = 'u32[]', space=smem, size = 0x4, offset = 0x4, fixed_abs, tag = 'smem constant byte address 0x4 - core index']
  #allocation1 [shape = 'u32[144,128]{1,0:T(1,128)}', space=vmem, size = 0x12000, scoped, tag = 'internal scratch']
  #allocation2 [shape = 'f32[1,1]{1,0:T(1,128)S(6)}', space=smem, size = 0x200, scoped, tag = 'scoped memory for rbf_pallas.1']
  %s0 = inlined_call_operand.<no memory space> [shape: f32[1,1], index: 0, kind: input, shape index: {}]
  %s1 = inlined_call_operand.vmem [shape: f32[16,6], index: 1, kind: input, shape index: {}]
  %s2 = inlined_call_operand.vmem [shape: f32[6,128], index: 2, kind: input, shape index: {}]
  %s3 = inlined_call_operand.vmem [shape: f32[16,128], index: 3, kind: output, shape index: {}]
  %s4 = sld [smem:[#allocation0]]
  $region22: #{rbf_pallas.1} parent=0
    _
  %s6 = ssub.s32 1, %s4
  %s7 = scalar_select 0, %s6, %s4
  %8 = sst [smem:[#allocation2]] %s0
  // Predicated region
  $region2: #{rbf_pallas.1} parent=0 // pred_check
    _
  $region3: #{rbf_pallas.1} parent=0 // pred_check_branch
    %10 = sbr.rel (0) target = $region5
  $region4: #{rbf_pallas.1} parent=0 // pred_region
    _
  $region5: #{rbf_pallas.1} parent=0 // pred_fallthru
    _
  // Predicated region
  $region6: #{rbf_pallas.1} parent=0 // pred_check
    _
  $region7: #{rbf_pallas.1} parent=0 // pred_check_branch
    %12 = sbr.rel (0) target = $region9
  $region8: #{rbf_pallas.1} parent=0 // pred_region
    _
  $region9: #{rbf_pallas.1} parent=0 // pred_fallthru
    _
  // Predicated region
  $region10: #{rbf_pallas.1} parent=0 // pred_check
    _
  $region11: #{rbf_pallas.1} parent=0 // pred_check_branch
    %14 = sbr.rel (0) target = $region13
  $region12: #{rbf_pallas.1} parent=0 // pred_region
    _
  $region13: #{rbf_pallas.1} parent=0 // pred_fallthru
    _
  %v15 = vld [vmem:[%s1] sm:$0xff]
  %v16 = vld [vmem:[%s1 + $0x8] sm:$0xff]
  %v17 = vld [vmem:[%s2] sm:$0x3f]
  %vm18 = vcmask 48128
  %v20 = vsel %vm18, %v15, 0
  %v23 = vsel %vm18, %v16, 0
  %vm25 = vcmask 1045504
  %v27 = vsel %vm25, %v17, 0
  %29 = vmatprep.subr.mxu0 0.0
  %30 = vmatpush1.msra.mxu0 %v27
  %31 = vmatprep.subr.mxu0 0.0
  %32 = vmatpush1.msra.mxu0 0.0
  %33 = vmatprep.subr.mxu0 0.0
  %34 = vmatpush1.msra.mxu0 0.0
  %35 = vmatprep.subr.mxu0 0.0
  %36 = vmatpush1.msra.mxu0 0.0
  %37 = vmatprep.subr.mxu0 0.0
  %38 = vmatpush1.msra.mxu0 0.0
  %39 = vmatprep.subr.mxu0 0.0
  %40 = vmatpush1.msra.mxu0 0.0
  %41 = vmatprep.subr.mxu0 0.0
  %42 = vmatpush1.msra.mxu0 0.0
  %43 = vmatprep.subr.mxu0 0.0
  %44 = vmatpush1.msra.mxu0 0.0
  %45 = vmatprep.subr.mxu0 0.0
  %46 = vmatpush1.msra.mxu0 0.0
  %47 = vmatprep.subr.mxu0 0.0
  %48 = vmatpush1.msra.mxu0 0.0
  %49 = vmatprep.subr.mxu0 0.0
  %50 = vmatpush1.msra.mxu0 0.0
  %51 = vmatprep.subr.mxu0 0.0
  %52 = vmatpush1.msra.mxu0 0.0
  %53 = vmatprep.subr.mxu0 0.0
  %54 = vmatpush1.msra.mxu0 0.0
  %55 = vmatprep.subr.mxu0 0.0
  %56 = vmatpush1.msra.mxu0 0.0
  %57 = vmatprep.subr.mxu0 0.0
  %58 = vmatpush1.msra.mxu0 0.0
  %59 = vmatprep.subr.mxu0 0.0
  %60 = vmatpush1.msra.mxu0 0.0
  %61 = vmatprep.subr.mxu0 0.0
  %62 = vmatpush1.msra.mxu0 0.0
  %63 = vmatprep.subr.mxu0 0.0
  %64 = vmatpush1.msra.mxu0 0.0
  %65 = vmatprep.subr.mxu0 0.0
  %66 = vmatpush1.msra.mxu0 0.0
  %67 = vmatprep.subr.mxu0 0.0
  %68 = vmatpush1.msra.mxu0 0.0
  %69 = vmatprep.subr.mxu0 0.0
  %70 = vmatpush1.msra.mxu0 0.0
  %71 = vmatprep.subr.mxu0 0.0
  %72 = vmatpush1.msra.mxu0 0.0
  %73 = vmatprep.subr.mxu0 0.0
  %74 = vmatpush1.msra.mxu0 0.0
  %75 = vmatprep.subr.mxu0 0.0
  %76 = vmatpush1.msra.mxu0 0.0
  %77 = vmatprep.subr.mxu0 0.0
  %78 = vmatpush1.msra.mxu0 0.0
  %79 = vmatprep.subr.mxu0 0.0
  %80 = vmatpush1.msra.mxu0 0.0
  %81 = vmatprep.subr.mxu0 0.0
  %82 = vmatpush1.msra.mxu0 0.0
  %83 = vmatprep.subr.mxu0 0.0
  %84 = vmatpush1.msra.mxu0 0.0
  %85 = vmatprep.subr.mxu0 0.0
  %86 = vmatpush1.msra.mxu0 0.0
  %87 = vmatprep.subr.mxu0 0.0
  %88 = vmatpush1.msra.mxu0 0.0
  %89 = vmatprep.subr.mxu0 0.0
  %90 = vmatpush1.msra.mxu0 0.0
  %91 = vmatprep.subr.mxu0 0.0
  %92 = vmatpush1.msra.mxu0 0.0
  %93 = vmatprep.mubr.f32.mxu0 0.0
  %94 = vmatmul.mubr.f32.gmra.mrb[0].mxu0 %v20
  %v95 = vpop.f32.mrb[0].mxu0
  %v96 = vadd.f32 0.0, %v95
  %v97 = vpop.f32.mrb[0].mxu0
  %98 = vmatprep.mubr.f32.mxu0 0.0
  %99 = vmatmul.mubr.f32.gmra.mrb[0].mxu0 %v23
  %v100 = vpop.f32.mrb[0].mxu0
  %v101 = vadd.f32 0.0, %v100
  %v102 = vpop.f32.mrb[0].mxu0
  %103 = vdwg.mxu0
  %s104 = sld [smem:[#allocation2]]
  %v105 = vstv %s104
  %v106 = vmin.f32 %v96, %v105
  %v107 = vmin.f32 %v101, %v105
  %v108 = vmul.f32 %v106, 1.442695
  %v109 = vpow.pop %v108
  %v110 = vmul.f32 %v107, 1.442695
  %v111 = vpow.pop %v110
  %112 = vst [vmem:[%s3] sm:$0xff] %v109
  %113 = vst [vmem:[%s3 + $0x8] sm:$0xff] %v111
  // Predicated region
  $region14: #{rbf_pallas.1} parent=0 // pred_check
    _
  $region15: #{rbf_pallas.1} parent=0 // pred_check_branch
    %115 = sbr.rel (0) target = $region17
  $region16: #{rbf_pallas.1} parent=0 // pred_region
    _
  $region17: #{rbf_pallas.1} parent=0 // pred_fallthru
    _
  // Predicated region
  $region18: #{rbf_pallas.1} parent=0 // pred_check
    _
  $region19: #{rbf_pallas.1} parent=0 // pred_check_branch
    %117 = sbr.rel (0) target = $region21
  $region20: #{rbf_pallas.1} parent=0 // pred_region
    _
  $region21: #{rbf_pallas.1} parent=0 // pred_fallthru
    _

</llo_original>
